<compile_context>
chip_gen: v5e
topology: v5e:2x2
jax: 0.10.0
libtpu: 0.0.40
codegen_flags: <defaults>
</compile_context>

<pallas_src>
from functools import partial

import jax
import jax.numpy as jnp
from jax import lax
from jax.experimental import pallas as pl
from jax.experimental.pallas import tpu as pltpu


def _rmsnorm_kernel(x_ref, g_ref, o_ref, *, scale, eps):
    # x_ref: (1, C, T) tile;  g_ref: (1, C, 1);  o_ref: (1, C, T).
    x = x_ref[...].astype(jnp.float32)
    g = g_ref[...].astype(jnp.float32)
    # Channel (sublane-axis) reduction -> (1, 1, T).
    sumsq = jnp.sum(x * x, axis=1, keepdims=True)
    # max(sqrt(s), eps) == sqrt(max(s, eps^2)); rsqrt runs on the EUP slot and
    # the sqrt(C) scale is folded into the narrow (1, 1, T) vector, so only
    # two full-width VALU multiplies remain (x * inv, * g).
    inv = lax.rsqrt(jnp.maximum(sumsq, eps * eps)) * scale
    o_ref[...] = (x * inv * g).astype(o_ref.dtype)


def _round_up(v, m):
    return (v + m - 1) // m * m


def _pick_hw_tile(C, HW, itemsize, budget_bytes=4 * 1024 * 1024):
    """Pick a 128-multiple lane tile so in+out double-buffers stay ~<= budget.

    Budget of 4 MiB keeps total pipeline buffers well under the smallest
    default scoped-VMEM limit (v5e: 16 MiB) while tiles stay large enough
    (>= 512 lanes for typical C) to sit near the HBM roofline.
    """
    # Per lane column: C elems (sublane-padded to >=8), in + out, double-buffered.
    per_lane = max(C, 8) * itemsize * 2 * 2
    tile = (budget_bytes // per_lane) // 128 * 128
    tile = max(128, tile)
    tile = min(tile, _round_up(HW, 128))
    return int(tile)


def rmsnorm(x, g, *, eps=1e-12):
    """x: (N, C, H, W) (NCHW), f32 or bf16.  g: (1, C, 1, 1)."""
    N, C, H, W = x.shape
    HW = H * W
    scale = float(C) ** 0.5

    x3 = x.reshape(N, C, HW)
    g3 = g.reshape(1, C, 1)

    hw_tile = _pick_hw_tile(C, HW, x.dtype.itemsize)
    HW_pad = _round_up(HW, hw_tile)
    if HW_pad != HW:
        # Keep the lane axis 128-aligned -> unmasked stores.  Padded columns
        # have sumsq == 0 and therefore produce zeros; sliced off below.
        x3 = jnp.pad(x3, ((0, 0), (0, 0), (0, HW_pad - HW)))

    grid = (N, HW_pad // hw_tile)

    out = pl.pallas_call(
        partial(_rmsnorm_kernel, scale=scale, eps=eps),
        out_shape=jax.ShapeDtypeStruct((N, C, HW_pad), x.dtype),
        grid_spec=pltpu.PrefetchScalarGridSpec(
            num_scalar_prefetch=0,
            grid=grid,
            in_specs=[
                pl.BlockSpec((1, C, hw_tile), lambda n, s: (n, 0, s)),
                pl.BlockSpec((1, C, 1), lambda n, s: (0, 0, 0)),
            ],
            out_specs=pl.BlockSpec((1, C, hw_tile), lambda n, s: (n, 0, s)),
        ),
        compiler_params=pltpu.CompilerParams(
            dimension_semantics=("parallel", "parallel"),
        ),
    )(x3, g3)

    if HW_pad != HW:
        out = out[:, :, :HW]
    return out.reshape(N, C, H, W)


def _reference(x, g):
    # Pure-JAX reference of F.normalize(x, dim=1) * g * sqrt(C), in f32.
    x = x.astype(jnp.float32)
    g = g.astype(jnp.float32)
    C = x.shape[1]
    norm = jnp.sqrt(jnp.sum(x * x, axis=1, keepdims=True))
    return x / jnp.maximum(norm, 1e-12) * g * (C ** 0.5)


if __name__ == "__main__":
    key = jax.random.PRNGKey(0)
    N, C, H, W = 2, 4, 16, 16

    x = jax.random.normal(key, (N, C, H, W), dtype=jnp.float32)
    # Deterministic parameter init, as in the module: g = ones(1, dim, 1, 1)
    g = jnp.ones((1, C, 1, 1), dtype=jnp.float32)

    out = rmsnorm(x, g)
    jax.block_until_ready(out)
    ref = _reference(x, g)
    assert out.shape == (N, C, H, W)
    assert jnp.allclose(out, ref, atol=1e-5, rtol=1e-5)

    # Non-128-multiple spatial extent (exercises the lane-padding path).
    x2 = jax.random.normal(jax.random.PRNGKey(1), (2, 4, 10, 10), dtype=jnp.float32)
    out2 = rmsnorm(x2, g)
    jax.block_until_ready(out2)
    assert out2.shape == x2.shape
    assert jnp.allclose(out2, _reference(x2, g), atol=1e-5, rtol=1e-5)

    # bf16 I/O with f32 accumulation inside the kernel.
    xb = x.astype(jnp.bfloat16)
    outb = rmsnorm(xb, g.astype(jnp.bfloat16))
    jax.block_until_ready(outb)
    assert outb.dtype == jnp.bfloat16
    assert jnp.allclose(outb.astype(jnp.float32), ref, atol=5e-2, rtol=5e-2)

    print("KERNEL_OK")
</pallas_src>

<mosaic_0001>
module attributes {stable_mosaic.version = 11 : i64} {
  func.func @_rmsnorm_kernel(%arg0: i32, %arg1: i32, %arg2: memref<1x4x256xf32, #tpu.memory_space<vmem>>, %arg3: memref<1x4x1xf32, #tpu.memory_space<vmem>>, %arg4: memref<1x4x256xf32, #tpu.memory_space<vmem>>) attributes {dimension_semantics = [#tpu.dimension_semantics<parallel>, #tpu.dimension_semantics<parallel>], iteration_bounds = array<i64: 2, 1>, scalar_prefetch = 0 : i64, scratch_operands = 0 : i64, tpu.core_type = #tpu.core_type<tc>, window_params = [{transform_indices = @transform_0, window_bounds = array<i64: 1, 4, 256>}, {pipeline_mode = #tpu.pipeline_mode<synchronous>, transform_indices = @transform_1, window_bounds = array<i64: 1, 4, 1>}, {transform_indices = @transform_2, window_bounds = array<i64: 1, 4, 256>}]} {
    %c0 = arith.constant 0 : index
    %c0_0 = arith.constant 0 : index
    %c0_1 = arith.constant 0 : index
    %0 = vector.load %arg2[%c0, %c0_0, %c0_1] : memref<1x4x256xf32, #tpu.memory_space<vmem>>, vector<1x4x256xf32>
    %c0_2 = arith.constant 0 : index
    %c0_3 = arith.constant 0 : index
    %c0_4 = arith.constant 0 : index
    %1 = vector.load %arg3[%c0_2, %c0_3, %c0_4] : memref<1x4x1xf32, #tpu.memory_space<vmem>>, vector<1x4x1xf32>
    %2 = arith.mulf %0, %0 : vector<1x4x256xf32>
    %cst = arith.constant dense<0.000000e+00> : vector<1x256xf32>
    %3 = vector.multi_reduction <add>, %2, %cst [1] : vector<1x4x256xf32> to vector<1x256xf32>
    %4 = vector.shape_cast %3 : vector<1x256xf32> to vector<1x1x256xf32>
    %cst_5 = arith.constant 1.000000e-24 : f32
    %5 = vector.broadcast %cst_5 : f32 to vector<1x1x256xf32>
    %6 = arith.maximumf %4, %5 : vector<1x1x256xf32>
    %7 = math.rsqrt %6 : vector<1x1x256xf32>
    %cst_6 = arith.constant 2.000000e+00 : f32
    %8 = vector.broadcast %cst_6 : f32 to vector<1x1x256xf32>
    %9 = arith.mulf %7, %8 : vector<1x1x256xf32>
    %10 = vector.broadcast %9 : vector<1x1x256xf32> to vector<1x4x256xf32>
    %11 = arith.mulf %0, %10 : vector<1x4x256xf32>
    %12 = vector.broadcast %1 : vector<1x4x1xf32> to vector<1x4x256xf32>
    %13 = arith.mulf %11, %12 : vector<1x4x256xf32>
    %c0_7 = arith.constant 0 : index
    %c0_8 = arith.constant 0 : index
    %c0_9 = arith.constant 0 : index
    %14 = vector.load %arg4[%c0_7, %c0_8, %c0_9] : memref<1x4x256xf32, #tpu.memory_space<vmem>>, vector<1x4x256xf32>
    tpu.vector_store %arg4[%c0_7, %c0_8, %c0_9], %13 {strides = array<i32>} : memref<1x4x256xf32, #tpu.memory_space<vmem>>, vector<1x4x256xf32>,
    return
  }
  func.func @transform_0(%arg0: i32, %arg1: i32) -> (i32, i32, i32) {
    %c0_i32 = arith.constant 0 : i32
    %c0_i32_0 = arith.constant 0 : i32
    return %arg0, %c0_i32, %arg1 : i32, i32, i32
  }
  func.func @transform_1(%arg0: i32, %arg1: i32) -> (i32, i32, i32) {
    %c0_i32 = arith.constant 0 : i32
    %c0_i32_0 = arith.constant 0 : i32
    %c0_i32_1 = arith.constant 0 : i32
    %c0_i32_2 = arith.constant 0 : i32
    return %c0_i32, %c0_i32_0, %c0_i32_1 : i32, i32, i32
  }
  func.func @transform_2(%arg0: i32, %arg1: i32) -> (i32, i32, i32) {
    %c0_i32 = arith.constant 0 : i32
    %c0_i32_0 = arith.constant 0 : i32
    return %arg0, %c0_i32, %arg1 : i32, i32, i32
  }
}

</mosaic_0001>

<llo_original>
// kernel: tpu_custom_call.1
$region0: #{tpu_custom_call.1}
  #allocation0 [shape = 'u32[]', space=smem, size = 0x4, offset = 0x4, fixed_abs, tag = 'smem constant byte address 0x4 - core index']
  #allocation1 [shape = 'u32[72,128]{1,0:T(1,128)}', space=vmem, size = 0x9000, scoped, tag = 'internal scratch']
  %s0 = inlined_call_operand.hbm [shape: f32[2,4,256], index: 0, kind: input, shape index: {}]
  %s1 = inlined_call_operand.vmem [shape: f32[1,4,1], index: 1, kind: input, shape index: {}]
  %s2 = inlined_call_operand.hbm [shape: f32[2,4,256], index: 2, kind: output, shape index: {}]
  %s3 = sld [smem:[#allocation0]]
  $region45: #{tpu_custom_call.1} parent=0
    _
  %s5 = ssub.s32 1, %s3
  %s6 = scalar_select 0, %s5, %s3
  $region1: #{tpu_custom_call.1} parent=0
    #allocation2 [shape = 'u8[8192]{0}', space=vmem, size = 0x2000, scoped, tag = 'input window, operand 0']
    #allocation3 [shape = 's32[2]{0}', space=sflag, size = 0x8, scoped, tag = 'scoped memory for tpu_custom_call.1']
    #allocation4 [shape = 's32[2]{0}', space=sflag, size = 0x8, scoped, tag = 'scoped memory for tpu_custom_call.1']
    #allocation5 [shape = 'u8[8192]{0}', space=vmem, size = 0x2000, scoped, tag = 'output window, operand 0']
    %7 = vsyncpa [#allocation3], 0
    %s8 = scalar_lea.sflag [#allocation3], 1
    %9 = vsyncpa %s8, 0
    %10 = vsyncpa [#allocation4], 0
    %s11 = scalar_lea.sflag [#allocation4], 1
    %12 = vsyncpa %s11, 0
    loop: start=0, step=1, limit=4
    $region2: #{tpu_custom_call.1} parent=1 // loop_pre_header
      _
    $region3: #{tpu_custom_call.1} parent=1 // loop_header
      %s14 = sphi 0, %s18
      %p15 = scmp.ge.s32.totalorder %s14, 4
      %s21 = sphi 0, %s33
      %s22 = sphi 0, %s29
      %s23 = sphi 0, %s21
      %s24 = sphi 0, %s22
      %s25 = sphi 0, %s23
      %s26 = sphi 0, %s24
      %s38 = sphi 0, %s40
      %s41 = sphi 0, %s38
      %s42 = sphi 0, %s41
      %s58 = sphi 0, %s42
      %s62 = sphi 0, %s62
      %s64 = sphi 0, %s62
      %s65 = sphi 0, %s64
      %s79 = sphi 0, %s65
      %s87 = sphi 0, %s89
      %s90 = sphi 0, %s87
      %s91 = sphi 0, %s90
      %s107 = sphi 0, %s91
    $region4: #{tpu_custom_call.1} parent=1 // loop_header_branch
      %17 = sbr.rel (%p15) target = $region8
    $region5: #{tpu_custom_call.1} parent=1 // loop_body
      %s19 = ssub.s32 %s14, 1
      %s20 = ssub.s32 %s14, 2
      %s27 = sadd.s32 1, %s22
      %p28 = scmp.ge.s32.totalorder %s27, 1
      %s29 = scalar_select %p28, 0, %s27
      %s30 = sadd.s32 1, %s21
      %s31 = scalar_select %p28, %s30, %s21
      %p32 = scmp.ge.s32.totalorder %s31, 2
      %s33 = scalar_select %p32, 0, %s31
      %s34 = ssub.s32 %s21, %s33
      %s35 = ssub.s32 %s22, %s29
      %s36 = sor.u32 %s34, %s35
      %p37 = scmp.eq.s32.totalorder %s36, 0
      %s39 = sadd.s32 %s38, 1
      %s40 = scalar_select %p37, %s38, %s39
      %p43 = pneg %p37
      %p44 = scmp.eq.s32.totalorder %s14, 1
      %p45 = por %p43, %p44
      %p46 = scmp.ne.s32.totalorder %s38, %s41
      %p47 = scmp.eq.s32.totalorder %s14, 0
      %p48 = por %p46, %p47
      %p49 = scmp.ne.s32.totalorder %s38, %s41
      %p50 = scmp.eq.s32.totalorder %s19, 1
      %p51 = por %p49, %p50
      %p52 = scmp.ne.s32.totalorder %s41, %s42
      %p53 = scmp.eq.s32.totalorder %s19, 0
      %p54 = por %p52, %p53
      %p55 = scmp.ne.s32.totalorder %s41, %s42
      %p56 = scmp.eq.s32.totalorder %s20, 1
      %p57 = por %p55, %p56
      %p59 = scmp.ne.s32.totalorder %s42, %s58
      %p60 = scmp.eq.s32.totalorder %s20, 0
      %p61 = por %p59, %p60
      %s63 = sadd.s32 %s62, 1
      %p66 = scmp.eq.s32.totalorder %s14, 1
      %p67 = scmp.ne.s32.totalorder %s62, %s64
      %p68 = scmp.eq.s32.totalorder %s14, 0
      %p69 = por %p67, %p68
      %p70 = scmp.ne.s32.totalorder %s62, %s64
      %p71 = scmp.eq.s32.totalorder %s19, 1
      %p72 = por %p70, %p71
      %p73 = scmp.ne.s32.totalorder %s64, %s65
      %p74 = scmp.eq.s32.totalorder %s19, 0
      %p75 = por %p73, %p74
      %p76 = scmp.ne.s32.totalorder %s64, %s65
      %p77 = scmp.eq.s32.totalorder %s20, 1
      %p78 = por %p76, %p77
      %p80 = scmp.ne.s32.totalorder %s65, %s79
      %p81 = scmp.eq.s32.totalorder %s20, 0
      %p82 = por %p80, %p81
      %s83 = ssub.s32 %s21, %s33
      %s84 = ssub.s32 %s22, %s29
      %s85 = sor.u32 %s83, %s84
      %p86 = scmp.eq.s32.totalorder %s85, 0
      %s88 = sadd.s32 %s87, 1
      %s89 = scalar_select %p86, %s87, %s88
      %p92 = pneg %p86
      %p93 = scmp.eq.s32.totalorder %s14, 1
      %p94 = por %p92, %p93
      %p95 = scmp.ne.s32.totalorder %s87, %s90
      %p96 = scmp.eq.s32.totalorder %s14, 0
      %p97 = por %p95, %p96
      %p98 = scmp.ne.s32.totalorder %s87, %s90
      %p99 = scmp.eq.s32.totalorder %s19, 1
      %p100 = por %p98, %p99
      %p101 = scmp.ne.s32.totalorder %s90, %s91
      %p102 = scmp.eq.s32.totalorder %s19, 0
      %p103 = por %p101, %p102
      %p104 = scmp.ne.s32.totalorder %s90, %s91
      %p105 = scmp.eq.s32.totalorder %s20, 1
      %p106 = por %p104, %p105
      %p108 = scmp.ne.s32.totalorder %s91, %s107
      %p109 = scmp.eq.s32.totalorder %s20, 0
      %p110 = por %p108, %p109
      %p111 = scmp.le.s32.totalorder 1, %s14
      %p112 = scmp.lt.s32.totalorder %s14, 3
      %p113 = pnand %p111, %p112
      %p114 = pneg %p113
      // Predicated region
      $region9: #{tpu_custom_call.1} parent=5 // pred_check
        _
      $region10: #{tpu_custom_call.1} parent=5 // pred_check_branch
        %116 = sbr.rel (%p113) target = $region12
      $region11: #{tpu_custom_call.1} parent=5 // pred_region
        %s117 = ssub.s32 %s14, 1
        // Predicated region
        $region13: #{tpu_custom_call.1} parent=11 // pred_check
          %p118 = pneg %p75
        $region14: #{tpu_custom_call.1} parent=11 // pred_check_branch
          %120 = sbr.rel (%p118) target = $region16
        $region15: #{tpu_custom_call.1} parent=11 // pred_region
          _
        $region16: #{tpu_custom_call.1} parent=11 // pred_fallthru
          _
      $region12: #{tpu_custom_call.1} parent=5 // pred_fallthru
        _
      %p121 = scmp.lt.s32.totalorder %s14, 2
      // Predicated region
      $region17: #{tpu_custom_call.1} parent=5 // pred_check
        %p122 = pneg %p121
      $region18: #{tpu_custom_call.1} parent=5 // pred_check_branch
        %124 = sbr.rel (%p122) target = $region20
      $region19: #{tpu_custom_call.1} parent=5 // pred_region
        // Predicated region
        $region21: #{tpu_custom_call.1} parent=19 // pred_check
          %p125 = pneg %p48
        $region22: #{tpu_custom_call.1} parent=19 // pred_check_branch
          %127 = sbr.rel (%p125) target = $region24
        $region23: #{tpu_custom_call.1} parent=19 // pred_region
          %s128 = sand.u32 %s38, 1
          %s129 = scalar_lea.sflag [#allocation3], %s128
          %s130 = sand.u32 %s38, 1
          %s131 = smul.addr %s130, 8
          %s132 = scalar_lea.vmem [#allocation2], %s131
          %s133 = smul.u32 2, %s22
          %135 = vsyncadd %s129, 0
          %s136 = smul.addr %s21, 2
          %s137 = sadd.s32 %s133, %s136
          %s138 = smul.addr %s137, 4
          %s139 = scalar_lea.hbm %s0, %s138
          %s141 = sshll.u32 %s139, 4
          %s142 = int_to_ptr.hbm [resolvable:$true] %s141
          %s143 = sshll.u32 %s132, 4
          %s144 = int_to_ptr.vmem [resolvable:$true] %s143
          %146 = dma.hbm_to_vmem [thread:$0]  %s142, 128, %s144, %s129
        $region24: #{tpu_custom_call.1} parent=19 // pred_fallthru
          _
      $region20: #{tpu_custom_call.1} parent=5 // pred_fallthru
        _
      %p147 = scmp.le.s32.totalorder 1, %s14
      %p148 = scmp.lt.s32.totalorder %s14, 3
      %p149 = pnand %p147, %p148
      %p150 = pneg %p149
      // Predicated region
      $region25: #{tpu_custom_call.1} parent=5 // pred_check
        _
      $region26: #{tpu_custom_call.1} parent=5 // pred_check_branch
        %152 = sbr.rel (%p149) target = $region28
      $region27: #{tpu_custom_call.1} parent=5 // pred_region
        %s153 = ssub.s32 %s14, 1
        %s154 = sand.u32 %s41, 1
        %s155 = scalar_lea.sflag [#allocation3], %s154
        %s156 = sand.u32 %s41, 1
        %s157 = smul.addr %s156, 8
        %s158 = scalar_lea.vmem [#allocation2], %s157
        // Predicated region
        $region29: #{tpu_custom_call.1} parent=27 // pred_check
          %p159 = pneg %p54
        $region30: #{tpu_custom_call.1} parent=27 // pred_check_branch
          %161 = sbr.rel (%p159) target = $region32
        $region31: #{tpu_custom_call.1} parent=27 // pred_region
          %163 = dma.done %s155, 128
        $region32: #{tpu_custom_call.1} parent=27 // pred_fallthru
          _
        %s164 = sand.u32 %s41, 1
        %s165 = scalar_lea.sflag [#allocation3], %s164
        %s166 = sand.u32 %s41, 1
        %s167 = smul.addr %s166, 8
        %s168 = scalar_lea.vmem [#allocation2], %s167
        %p169 = pneg %p54
        %p170 = pneg %p51
        %p171 = pneg %p75
        %p172 = pneg %p72
        %p173 = pneg %p103
        %p174 = pneg %p100
        %s175 = sand.u32 %s90, 1
        %s176 = scalar_lea.sflag [#allocation4], %s175
        %s177 = sand.u32 %s90, 1
        %s178 = smul.addr %s177, 8
        %s179 = scalar_lea.vmem [#allocation5], %s178
        %s180 = smul.u32 2, %s24
        %s181 = smul.u32 2, %s24
        %v182 = vld [vmem:[%s158] sm:$0xff]
        %v183 = vld [vmem:[%s1] sm:$0xf]
        %v184 = vmul.f32 %v182, %v182
        %186 = vst [vmem:[#allocation1] ss:$2 sm:$0xff] %v184
        %v187 = vld.sshfl [vmem:[#allocation1] sm:$0xff pattern:$0x75316420]
        %v188 = vld.sshfl [vmem:[#allocation1 + $0x8] sm:$0xff pattern:$0x75316420]
        %vm191 = vcmask 1043456
        %v192 = vsel %vm191, %v187, 0.0
        %v193 = vrot.slane %v192, 4
        %v194 = vadd.f32 %v192, %v193
        %v195 = vrot.slane %v194, 2
        %v196 = vadd.f32 %v194, %v195
        %v197 = vrot.slane %v196, 1
        %v198 = vadd.f32 %v196, %v197
        %v199 = vsel %vm191, %v188, 0.0
        %v200 = vrot.slane %v199, 4
        %v201 = vadd.f32 %v199, %v200
        %v202 = vrot.slane %v201, 2
        %v203 = vadd.f32 %v201, %v202
        %v204 = vrot.slane %v203, 1
        %v205 = vadd.f32 %v203, %v204
        %v206 = vmax.f32 %v198, 1e-24
        %v207 = vmax.f32 %v205, 1e-24
        %v208 = vrsqrt.pop %v206
        %v209 = vmul.f32 %v208, %v206
        %v210 = vmul.f32 %v209, %v208
        %v211 = vmul.f32 0.5, %v210
        %v212 = vsub.f32 1.5, %v211
        %v213 = vmul.f32 %v208, %v212
        %vm214 = vweird.f32 %v206
        %vm215 = vweird.f32 %v208
        %vm216 = vmor %vm214, %vm215
        %v217 = vsel %vm216, %v208, %v213
        %v218 = vrsqrt.pop %v207
        %v219 = vmul.f32 %v218, %v207
        %v220 = vmul.f32 %v219, %v218
        %v221 = vmul.f32 0.5, %v220
        %v222 = vsub.f32 1.5, %v221
        %v223 = vmul.f32 %v218, %v222
        %vm224 = vweird.f32 %v207
        %vm225 = vweird.f32 %v218
        %vm226 = vmor %vm224, %vm225
        %v227 = vsel %vm226, %v218, %v223
        %v228 = vmul.f32 %v217, 2.0
        %v229 = vmul.f32 %v227, 2.0
        %v232 = vrot.slane %v229, 4
        %v233 = vsel %vm191, %v228, %v232
        %v235 = vmul.f32 %v182, %v233
        %237 = vset.pattern.permute.xlu0 0
        %238 = vperm.xlu0 %237, %v183
        %v239 = vpop.permute.xlu0 %238
        %v241 = vunpack.c.l.s4 839922192
        %v242 = vunpack.c.0.s8 %v241
        %v243 = vperm.slane %v239, %v242
        %v245 = vmul.f32 %v235, %v243
        %246 = vst [vmem:[%s179] sm:$0xff] %v245
        %s247 = sand.u32 %s90, 1
        %s248 = scalar_lea.sflag [#allocation4], %s247
        %s249 = sand.u32 %s90, 1
        %s250 = smul.addr %s249, 8
        %s251 = scalar_lea.vmem [#allocation5], %s250
        // Predicated region
        $region33: #{tpu_custom_call.1} parent=27 // pred_check
          %p252 = pneg %p100
        $region34: #{tpu_custom_call.1} parent=27 // pred_check_branch
          %254 = sbr.rel (%p252) target = $region36
        $region35: #{tpu_custom_call.1} parent=27 // pred_region
          %s255 = smul.u32 2, %s24
          %257 = vsyncadd %s248, 0
          %s258 = smul.addr %s23, 2
          %s259 = sadd.s32 %s255, %s258
          %s260 = smul.addr %s259, 4
          %s261 = scalar_lea.hbm %s2, %s260
          %s263 = sshll.u32 %s251, 4
          %s264 = int_to_ptr.vmem [resolvable:$true] %s263
          %s265 = sshll.u32 %s261, 4
          %s266 = int_to_ptr.hbm [resolvable:$true] %s265
          %268 = dma.vmem_to_hbm [thread:$0]  %s264, 128, %s266, %s248
        $region36: #{tpu_custom_call.1} parent=27 // pred_fallthru
          _
      $region28: #{tpu_custom_call.1} parent=5 // pred_fallthru
        _
      %p269 = scmp.le.s32.totalorder 2, %s14
      // Predicated region
      $region37: #{tpu_custom_call.1} parent=5 // pred_check
        %p270 = pneg %p269
      $region38: #{tpu_custom_call.1} parent=5 // pred_check_branch
        %272 = sbr.rel (%p270) target = $region40
      $region39: #{tpu_custom_call.1} parent=5 // pred_region
        %s273 = ssub.s32 %s14, 2
        // Predicated region
        $region41: #{tpu_custom_call.1} parent=39 // pred_check
          %p274 = pneg %p106
        $region42: #{tpu_custom_call.1} parent=39 // pred_check_branch
          %276 = sbr.rel (%p274) target = $region44
        $region43: #{tpu_custom_call.1} parent=39 // pred_region
          %s277 = sand.u32 %s91, 1
          %s278 = scalar_lea.sflag [#allocation4], %s277
          %s279 = sand.u32 %s91, 1
          %s280 = smul.addr %s279, 8
          %s281 = scalar_lea.vmem [#allocation5], %s280
          %283 = dma.done %s278, 128
        $region44: #{tpu_custom_call.1} parent=39 // pred_fallthru
          _
      $region40: #{tpu_custom_call.1} parent=5 // pred_fallthru
        _
    $region6: #{tpu_custom_call.1} parent=1 // loop_footer
      %s18 = sadd.s32 1, %s14
    $region7: #{tpu_custom_call.1} parent=1 // loop_footer_branch
      %13 = sbr.rel target = $region3
    $region8: #{tpu_custom_call.1} parent=1 // loop_exit
      _
    %284 = vsyncpa [#allocation3], 1
    %s285 = scalar_lea.sflag [#allocation3], 1
    %286 = vsyncpa %s285, 1
    %287 = vsyncpa [#allocation4], 1
    %s288 = scalar_lea.sflag [#allocation4], 1
    %289 = vsyncpa %s288, 1

</llo_original>
